<compile_context>
chip_gen: v5e
topology: v5e:2x2
jax: 0.10.0
libtpu: 0.0.40
codegen_flags: <defaults>
</compile_context>

<pallas_src>
import math

import jax
import jax.numpy as jnp
from jax import lax
from jax.experimental import pallas as pl
from jax.experimental.pallas import tpu as pltpu


def scorer_v2_kernel(sent_ref, cond_ref, maskb_ref, w_ref, out_ref):
    # sent_ref, cond_ref : (1, tS, H)   streamed sequence tile (native dtype)
    # maskb_ref          : (1, nS, tS)  f32 additive mask bias (0 / -inf), resident
    # w_ref              : (1, H)       temperature-scaled Linear(H, 1) weight, resident
    # out_ref            : (1, nS, tS)  f32 scores, resident across the tile axis
    s_idx = pl.program_id(1)

    # Hidden-dim contraction on the MXU; inputs stay in their native dtype
    # (bf16 is native on v6e/v7x VPU/MXU; on v5e the compiler inserts f32 casts).
    x = sent_ref[0] * cond_ref[0]                                       # (tS, H)
    # (1,H) x (tS,H), contracting on H -> lane-dense (1, tS): no result relayout
    # before the row store below. The RHS contracts its minor dim, which the MXU
    # consumes via the transposed-stationary-operand path rather than a full
    # (tS,H)->(H,tS) XLU transpose of the streamed tile.
    # TODO(synk): confirm with pl.lower_as_mlir that no full-tile vxpose is
    # emitted; if one shows up, switch to x @ w^T -> (tS,1) + a small relayout.
    score = lax.dot_general(
        w_ref[...], x,
        dimension_numbers=(((1,), (1,)), ((), ())),
        preferred_element_type=jnp.float32)                             # (1, tS)
    out_ref[0, pl.ds(s_idx, 1), :] = score

    # Masking + softmax epilogue, once per batch row, after every score tile of
    # this row is resident in the output block.
    @pl.when(s_idx == pl.num_programs(1) - 1)
    def _finalize():
        # Additive mask bias replaces masked_fill(..., -inf); the Linear bias is
        # dropped entirely (softmax is shift-invariant to a per-row scalar).
        sc = out_ref[0] + maskb_ref[0]                                  # (nS, tS)
        # NOTE: as in the PyTorch module, a fully-masked row yields NaNs.
        mx = jnp.max(jnp.max(sc, axis=-1, keepdims=True), axis=0, keepdims=True)
        e = jnp.exp(sc - mx)
        denom = jnp.sum(jnp.sum(e, axis=-1, keepdims=True), axis=0, keepdims=True)
        out_ref[0] = e * pl.reciprocal(denom, approx=False)


def _generation_budgets():
    """(target_tile_bytes, vmem_limit_cap_bytes), sized per TPU generation."""
    vmem_bytes = 64 * 1024 * 1024             # conservative default (v7x per-TC VMEM)
    try:
        vmem_bytes = int(pltpu.get_tpu_info().vmem_capacity_bytes)
    except Exception:                         # off-TPU tracing / API drift
        pass
    if vmem_bytes >= 100 * 1024 * 1024:       # v5e / v6e: 128 MiB VMEM, lower HBM BW
        return 12 * 1024 * 1024, 96 * 1024 * 1024
    return 5 * 1024 * 1024, 48 * 1024 * 1024  # v7x: 64 MiB per-TC VMEM


def _choose_seq_tile(S, H, itemsize, target_bytes):
    """Pick (tS, S_pad): tS is a multiple of 128 that divides S_pad (S rounded up
    to a multiple of 128) and whose (tS, H) slab fits the per-tile budget."""
    S_pad = ((S + 127) // 128) * 128
    row_bytes = max(1, H * itemsize)
    # Largest multiple of 128 whose (tS, H) slab fits the budget (>= 128).
    max_ts = max(128, (target_bytes // row_bytes) // 128 * 128)
    best = 128
    for cand in range(128, min(S_pad, max_ts) + 1, 128):
        if S_pad % cand == 0:
            best = cand
    return best, S_pad


def scorer_v2(sentence, condition, mask, weight, *,
              target_tile_bytes=None, vmem_cap_bytes=None):
    """sentence, condition: (B, S, H); mask: (B, S) (0 = masked); weight: (1, H).

    The nn.Linear bias is intentionally not an argument: softmax is invariant to
    adding a scalar uniformly across a row, so the bias has zero effect on the
    output of ScorerV2.forward.
    """
    B, S, H = sentence.shape
    temperature = 1.0 / math.sqrt(H)
    compute_dtype = sentence.dtype
    # Fold the temperature into the H-element weight (instead of an SxH multiply
    # per tile in the kernel); keep it in the streaming dtype so the MXU sees
    # matching (bf16/bf16 or f32/f32) operands.
    w_scaled = (weight.astype(jnp.float32) * temperature).astype(compute_dtype)
    w_scaled = w_scaled.reshape(1, H)

    default_tile, default_cap = _generation_budgets()
    if target_tile_bytes is None:
        target_tile_bytes = default_tile
    if vmem_cap_bytes is None:
        vmem_cap_bytes = default_cap

    itemsize = jnp.dtype(compute_dtype).itemsize
    tS, S_pad = _choose_seq_tile(S, H, itemsize, target_tile_bytes)
    nS = S_pad // tS

    # Pad the sequence axis so every tile is full and 128-lane aligned (no-op
    # when S is already a multiple of 128, the common case). Padded positions
    # are masked below, so they contribute exp(-inf) = 0 to the softmax.
    if S_pad != S:
        pad = S_pad - S
        sentence = jnp.pad(sentence, ((0, 0), (0, pad), (0, 0)))
        condition = jnp.pad(condition, ((0, 0), (0, pad), (0, 0)))
        mask = jnp.pad(mask, ((0, 0), (0, pad)))

    # Pre-bake the mask into an f32 additive bias (0 kept / -inf masked).
    mask_bias = jnp.where(mask == 0, -jnp.inf, 0.0).astype(jnp.float32)
    mask_bias = mask_bias.reshape(B, nS, tS)

    # 2 streamed inputs x 2 pipeline buffers x tile + small resident blocks,
    # capped per generation so the same sizing is safe on v7x's 64 MiB VMEM.
    tile_bytes = tS * H * itemsize
    resident_bytes = 4 * (2 * S_pad * 4)      # out + mask-bias blocks (x2 margin)
    vmem_limit = int(min(vmem_cap_bytes,
                         max(32 * 1024 * 1024, 6 * tile_bytes + resident_bytes)))

    out = pl.pallas_call(
        scorer_v2_kernel,
        out_shape=jax.ShapeDtypeStruct((B, nS, tS), jnp.float32),
        grid_spec=pltpu.PrefetchScalarGridSpec(
            num_scalar_prefetch=0,
            grid=(B, nS),
            in_specs=[
                pl.BlockSpec((1, tS, H), lambda b, s: (b, s, 0)),    # sentence tile
                pl.BlockSpec((1, tS, H), lambda b, s: (b, s, 0)),    # condition tile
                pl.BlockSpec((1, nS, tS), lambda b, s: (b, 0, 0)),   # mask bias (resident)
                pl.BlockSpec((1, H), lambda b, s: (0, 0)),           # scaled weight (resident)
            ],
            out_specs=pl.BlockSpec((1, nS, tS), lambda b, s: (b, 0, 0)),
        ),
        # TODO(synk): for B == 1 on v7x the "parallel" batch axis leaves the
        # second TensorCore idle; split the sequence-tile axis across cores with
        # per-core partial (max, sum, unnormalized out) and a tiny combine step.
        compiler_params=pltpu.CompilerParams(
            dimension_semantics=("parallel", "arbitrary"),
            vmem_limit_bytes=vmem_limit),
    )(sentence, condition, mask_bias, w_scaled)
    return out.reshape(B, S_pad)[:, :S]


def scorer_v2_ref(sentence, condition, mask, weight, bias):
    """Pure-JAX reference mirroring the PyTorch forward (bias included)."""
    B, S, H = sentence.shape
    temperature = 1.0 / math.sqrt(H)
    x = sentence * condition * temperature
    score = jnp.einsum("bsh,oh->bs", x, weight) + bias[0, 0]
    score = jnp.where(mask == 0, -jnp.inf, score)
    return jax.nn.softmax(score, axis=-1)


if __name__ == "__main__":
    B, S, H = 2, 8, 32

    key = jax.random.PRNGKey(0)
    k_sent, k_cond, k_w, k_b, k_mask = jax.random.split(key, 5)

    sentence = jax.random.normal(k_sent, (B, S, H), dtype=jnp.float32)
    condition = jax.random.normal(k_cond, (B, S, H), dtype=jnp.float32)

    # nn.Linear(H, 1) init: U(-1/sqrt(H), 1/sqrt(H)), deterministic via PRNG.
    bound = 1.0 / math.sqrt(H)
    weight = jax.random.uniform(k_w, (1, H), jnp.float32, -bound, bound)
    bias = jax.random.uniform(k_b, (1, 1), jnp.float32, -bound, bound)

    # Mask with a few zeroed positions (never a fully-masked row -> would NaN,
    # same as the PyTorch module).
    mask = (jax.random.uniform(k_mask, (B, S)) > 0.25).astype(jnp.int32)
    mask = mask.at[:, 0].set(1)

    # Kernel drops the bias (softmax shift-invariance); reference keeps it.
    out = scorer_v2(sentence, condition, mask, weight)
    out = jax.block_until_ready(out)

    ref = scorer_v2_ref(sentence, condition, mask, weight, bias)
    assert out.shape == (B, S)
    # Tolerance accommodates MXU f32 matmul pass-count / summation-order
    # differences vs. the XLA reference einsum (observed error is ~1e-6).
    assert jnp.allclose(out, ref, atol=2e-3, rtol=2e-3), (out, ref)
    # Softmax rows must sum to 1 (exact reciprocal used in the epilogue).
    row_sums = jnp.sum(out, axis=-1)
    assert jnp.allclose(row_sums, jnp.ones_like(row_sums), atol=1e-5), row_sums

    print("KERNEL_OK")
</pallas_src>

<mosaic_0001>
module attributes {stable_mosaic.version = 11 : i64} {
  func.func @scorer_v2_kernel(%arg0: i32, %arg1: i32, %arg2: memref<1x128x32xf32, #tpu.memory_space<vmem>>, %arg3: memref<1x128x32xf32, #tpu.memory_space<vmem>>, %arg4: memref<1x1x128xf32, #tpu.memory_space<vmem>>, %arg5: memref<1x32xf32, #tpu.memory_space<vmem>>, %arg6: memref<1x1x128xf32, #tpu.memory_space<vmem>>) attributes {dimension_semantics = [#tpu.dimension_semantics<parallel>, #tpu.dimension_semantics<arbitrary>], iteration_bounds = array<i64: 2, 1>, scalar_prefetch = 0 : i64, scratch_operands = 0 : i64, tpu.core_type = #tpu.core_type<tc>, window_params = [{transform_indices = @transform_0, window_bounds = array<i64: 1, 128, 32>}, {transform_indices = @transform_1, window_bounds = array<i64: 1, 128, 32>}, {transform_indices = @transform_2, window_bounds = array<i64: 1, 1, 128>}, {pipeline_mode = #tpu.pipeline_mode<synchronous>, transform_indices = @transform_3, window_bounds = array<i64: 1, 32>}, {transform_indices = @transform_4, window_bounds = array<i64: 1, 1, 128>}]} {
    %c0 = arith.constant 0 : index
    %c0_0 = arith.constant 0 : index
    %c0_1 = arith.constant 0 : index
    %0 = vector.load %arg2[%c0, %c0_0, %c0_1] : memref<1x128x32xf32, #tpu.memory_space<vmem>>, vector<1x128x32xf32>
    %1 = vector.shape_cast %0 : vector<1x128x32xf32> to vector<128x32xf32>
    %c0_2 = arith.constant 0 : index
    %c0_3 = arith.constant 0 : index
    %c0_4 = arith.constant 0 : index
    %2 = vector.load %arg3[%c0_2, %c0_3, %c0_4] : memref<1x128x32xf32, #tpu.memory_space<vmem>>, vector<1x128x32xf32>
    %3 = vector.shape_cast %2 : vector<1x128x32xf32> to vector<128x32xf32>
    %4 = arith.mulf %1, %3 : vector<128x32xf32>
    %c0_5 = arith.constant 0 : index
    %c0_6 = arith.constant 0 : index
    %5 = vector.load %arg5[%c0_5, %c0_6] : memref<1x32xf32, #tpu.memory_space<vmem>>, vector<1x32xf32>
    %cst = arith.constant dense<0.000000e+00> : vector<1x128xf32>
    %6 = tpu.matmul %5, %4, %cst {dimension_numbers = #tpu.dot_dimension_numbers<[1], [1], [0], [0], [0, 0, 1, 0], [], []>} : vector<1x32xf32>, vector<128x32xf32>, vector<1x128xf32> -> vector<1x128xf32>
    %c0_7 = arith.constant 0 : index
    %7 = arith.index_cast %arg1 : i32 to index
    %c0_8 = arith.constant 0 : index
    %8 = vector.load %arg6[%c0_7, %7, %c0_8] : memref<1x1x128xf32, #tpu.memory_space<vmem>>, vector<1x1x128xf32>
    %9 = vector.shape_cast %8 : vector<1x1x128xf32> to vector<1x128xf32>
    %10 = vector.shape_cast %6 : vector<1x128xf32> to vector<1x1x128xf32>
    tpu.vector_store %arg6[%c0_7, %7, %c0_8], %10 {strides = array<i32>} : memref<1x1x128xf32, #tpu.memory_space<vmem>>, vector<1x1x128xf32>,
    %c0_i32 = arith.constant 0 : i32
    %11 = arith.cmpi eq, %arg1, %c0_i32 : i32
    %12 = arith.extui %11 : i1 to i32
    %c0_i32_9 = arith.constant 0 : i32
    %13 = arith.cmpi ne, %12, %c0_i32_9 : i32
    scf.if %13 {
      %c0_10 = arith.constant 0 : index
      %c0_11 = arith.constant 0 : index
      %c0_12 = arith.constant 0 : index
      %14 = vector.load %arg6[%c0_10, %c0_11, %c0_12] : memref<1x1x128xf32, #tpu.memory_space<vmem>>, vector<1x1x128xf32>
      %15 = vector.shape_cast %14 : vector<1x1x128xf32> to vector<1x128xf32>
      %c0_13 = arith.constant 0 : index
      %c0_14 = arith.constant 0 : index
      %c0_15 = arith.constant 0 : index
      %16 = vector.load %arg4[%c0_13, %c0_14, %c0_15] : memref<1x1x128xf32, #tpu.memory_space<vmem>>, vector<1x1x128xf32>
      %17 = vector.shape_cast %16 : vector<1x1x128xf32> to vector<1x128xf32>
      %18 = arith.addf %15, %17 : vector<1x128xf32>
      %cst_16 = arith.constant dense<0xFF800000> : vector<1xf32>
      %19 = vector.multi_reduction <maximumf>, %18, %cst_16 [1] : vector<1x128xf32> to vector<1xf32>
      %20 = vector.shape_cast %19 : vector<1xf32> to vector<1x1xf32>
      %cst_17 = arith.constant dense<0xFF800000> : vector<1xf32>
      %21 = vector.multi_reduction <maximumf>, %20, %cst_17 [0] : vector<1x1xf32> to vector<1xf32>
      %22 = vector.shape_cast %21 : vector<1xf32> to vector<1x1xf32>
      %23 = vector.broadcast %22 : vector<1x1xf32> to vector<1x128xf32>
      %24 = arith.subf %18, %23 : vector<1x128xf32>
      %25 = math.exp %24 : vector<1x128xf32>
      %cst_18 = arith.constant dense<0.000000e+00> : vector<1xf32>
      %26 = vector.multi_reduction <add>, %25, %cst_18 [1] : vector<1x128xf32> to vector<1xf32>
      %27 = vector.shape_cast %26 : vector<1xf32> to vector<1x1xf32>
      %cst_19 = arith.constant dense<0.000000e+00> : vector<1xf32>
      %28 = vector.multi_reduction <add>, %27, %cst_19 [0] : vector<1x1xf32> to vector<1xf32>
      %29 = vector.shape_cast %28 : vector<1xf32> to vector<1x1xf32>
      %30 = tpu.reciprocal %29 : vector<1x1xf32> -> vector<1x1xf32>
      %31 = vector.broadcast %30 : vector<1x1xf32> to vector<1x128xf32>
      %32 = arith.mulf %25, %31 : vector<1x128xf32>
      %c0_20 = arith.constant 0 : index
      %c0_21 = arith.constant 0 : index
      %c0_22 = arith.constant 0 : index
      %33 = vector.load %arg6[%c0_20, %c0_21, %c0_22] : memref<1x1x128xf32, #tpu.memory_space<vmem>>, vector<1x1x128xf32>
      %34 = vector.shape_cast %33 : vector<1x1x128xf32> to vector<1x128xf32>
      %35 = vector.shape_cast %32 : vector<1x128xf32> to vector<1x1x128xf32>
      tpu.vector_store %arg6[%c0_20, %c0_21, %c0_22], %35 {strides = array<i32>} : memref<1x1x128xf32, #tpu.memory_space<vmem>>, vector<1x1x128xf32>,
    } else {
    }
    return
  }
  func.func @transform_0(%arg0: i32, %arg1: i32) -> (i32, i32, i32) {
    %c0_i32 = arith.constant 0 : i32
    %c0_i32_0 = arith.constant 0 : i32
    return %arg0, %arg1, %c0_i32 : i32, i32, i32
  }
  func.func @transform_1(%arg0: i32, %arg1: i32) -> (i32, i32, i32) {
    %c0_i32 = arith.constant 0 : i32
    %c0_i32_0 = arith.constant 0 : i32
    return %arg0, %arg1, %c0_i32 : i32, i32, i32
  }
  func.func @transform_2(%arg0: i32, %arg1: i32) -> (i32, i32, i32) {
    %c0_i32 = arith.constant 0 : i32
    %c0_i32_0 = arith.constant 0 : i32
    %c0_i32_1 = arith.constant 0 : i32
    return %arg0, %c0_i32, %c0_i32_0 : i32, i32, i32
  }
  func.func @transform_3(%arg0: i32, %arg1: i32) -> (i32, i32) {
    %c0_i32 = arith.constant 0 : i32
    %c0_i32_0 = arith.constant 0 : i32
    %c0_i32_1 = arith.constant 0 : i32
    return %c0_i32, %c0_i32_0 : i32, i32
  }
  func.func @transform_4(%arg0: i32, %arg1: i32) -> (i32, i32, i32) {
    %c0_i32 = arith.constant 0 : i32
    %c0_i32_0 = arith.constant 0 : i32
    %c0_i32_1 = arith.constant 0 : i32
    return %arg0, %c0_i32, %c0_i32_0 : i32, i32, i32
  }
}

</mosaic_0001>

<llo_original>
// kernel: tpu_custom_call.1
$region0: #{tpu_custom_call.1}
  #allocation0 [shape = 'u32[]', space=smem, size = 0x4, offset = 0x4, fixed_abs, tag = 'smem constant byte address 0x4 - core index']
  #allocation1 [shape = 'u32[72,128]{1,0:T(1,128)}', space=vmem, size = 0x9000, scoped, tag = 'internal scratch']
  %s0 = inlined_call_operand.vmem [shape: f32[2,128,32], index: 0, kind: input, shape index: {}]
  %s1 = inlined_call_operand.vmem [shape: f32[2,128,32], index: 1, kind: input, shape index: {}]
  %s2 = inlined_call_operand.vmem [shape: f32[2,1,128], index: 2, kind: input, shape index: {}]
  %s3 = inlined_call_operand.vmem [shape: f32[1,32], index: 3, kind: input, shape index: {}]
  %s4 = inlined_call_operand.hbm [shape: f32[2,1,128], index: 4, kind: output, shape index: {}]
  %s5 = sld [smem:[#allocation0]]
  $region53: #{tpu_custom_call.1} parent=0
    _
  %s7 = ssub.s32 1, %s5
  %s8 = scalar_select 0, %s7, %s5
  $region1: #{tpu_custom_call.1} parent=0
    #allocation2 [shape = 'u8[1024]{0}', space=vmem, size = 0x400, scoped, tag = 'output window, operand 0']
    #allocation3 [shape = 's32[2]{0}', space=sflag, size = 0x8, scoped, tag = 'scoped memory for tpu_custom_call.1']
    %9 = vsyncpa [#allocation3], 0
    %s10 = scalar_lea.sflag [#allocation3], 1
    %11 = vsyncpa %s10, 0
    loop: start=0, step=1, limit=4
    $region2: #{tpu_custom_call.1} parent=1 // loop_pre_header
      _
    $region3: #{tpu_custom_call.1} parent=1 // loop_header
      %s13 = sphi 0, %s17
      %p14 = scmp.ge.s32.totalorder %s13, 4
      %s20 = sphi 0, %s32
      %s21 = sphi 0, %s28
      %s22 = sphi 0, %s20
      %s23 = sphi 0, %s21
      %s24 = sphi 0, %s22
      %s25 = sphi 0, %s23
      %s37 = sphi 0, %s39
      %s40 = sphi 0, %s37
      %s41 = sphi 0, %s40
      %s57 = sphi 0, %s41
      %s65 = sphi 0, %s67
      %s68 = sphi 0, %s65
      %s69 = sphi 0, %s68
      %s85 = sphi 0, %s69
      %s91 = sphi 0, %s93
      %s94 = sphi 0, %s91
      %s95 = sphi 0, %s94
      %s111 = sphi 0, %s95
      %s115 = sphi 0, %s115
      %s117 = sphi 0, %s115
      %s118 = sphi 0, %s117
      %s132 = sphi 0, %s118
      %s138 = sphi 0, %s140
      %s141 = sphi 0, %s138
      %s142 = sphi 0, %s141
      %s158 = sphi 0, %s142
    $region4: #{tpu_custom_call.1} parent=1 // loop_header_branch
      %16 = sbr.rel (%p14) target = $region8
    $region5: #{tpu_custom_call.1} parent=1 // loop_body
      %s18 = ssub.s32 %s13, 1
      %s19 = ssub.s32 %s13, 2
      %s26 = sadd.s32 1, %s21
      %p27 = scmp.ge.s32.totalorder %s26, 1
      %s28 = scalar_select %p27, 0, %s26
      %s29 = sadd.s32 1, %s20
      %s30 = scalar_select %p27, %s29, %s20
      %p31 = scmp.ge.s32.totalorder %s30, 2
      %s32 = scalar_select %p31, 0, %s30
      %s33 = ssub.s32 %s20, %s32
      %s34 = ssub.s32 %s21, %s28
      %s35 = sor.u32 %s33, %s34
      %p36 = scmp.eq.s32.totalorder %s35, 0
      %s38 = sadd.s32 %s37, 1
      %s39 = scalar_select %p36, %s37, %s38
      %p42 = pneg %p36
      %p43 = scmp.eq.s32.totalorder %s13, 1
      %p44 = por %p42, %p43
      %p45 = scmp.ne.s32.totalorder %s37, %s40
      %p46 = scmp.eq.s32.totalorder %s13, 0
      %p47 = por %p45, %p46
      %p48 = scmp.ne.s32.totalorder %s37, %s40
      %p49 = scmp.eq.s32.totalorder %s18, 1
      %p50 = por %p48, %p49
      %p51 = scmp.ne.s32.totalorder %s40, %s41
      %p52 = scmp.eq.s32.totalorder %s18, 0
      %p53 = por %p51, %p52
      %p54 = scmp.ne.s32.totalorder %s40, %s41
      %p55 = scmp.eq.s32.totalorder %s19, 1
      %p56 = por %p54, %p55
      %p58 = scmp.ne.s32.totalorder %s41, %s57
      %p59 = scmp.eq.s32.totalorder %s19, 0
      %p60 = por %p58, %p59
      %s61 = ssub.s32 %s20, %s32
      %s62 = ssub.s32 %s21, %s28
      %s63 = sor.u32 %s61, %s62
      %p64 = scmp.eq.s32.totalorder %s63, 0
      %s66 = sadd.s32 %s65, 1
      %s67 = scalar_select %p64, %s65, %s66
      %p70 = pneg %p64
      %p71 = scmp.eq.s32.totalorder %s13, 1
      %p72 = por %p70, %p71
      %p73 = scmp.ne.s32.totalorder %s65, %s68
      %p74 = scmp.eq.s32.totalorder %s13, 0
      %p75 = por %p73, %p74
      %p76 = scmp.ne.s32.totalorder %s65, %s68
      %p77 = scmp.eq.s32.totalorder %s18, 1
      %p78 = por %p76, %p77
      %p79 = scmp.ne.s32.totalorder %s68, %s69
      %p80 = scmp.eq.s32.totalorder %s18, 0
      %p81 = por %p79, %p80
      %p82 = scmp.ne.s32.totalorder %s68, %s69
      %p83 = scmp.eq.s32.totalorder %s19, 1
      %p84 = por %p82, %p83
      %p86 = scmp.ne.s32.totalorder %s69, %s85
      %p87 = scmp.eq.s32.totalorder %s19, 0
      %p88 = por %p86, %p87
      %s89 = ssub.s32 %s20, %s32
      %p90 = scmp.eq.s32.totalorder %s89, 0
      %s92 = sadd.s32 %s91, 1
      %s93 = scalar_select %p90, %s91, %s92
      %p96 = pneg %p90
      %p97 = scmp.eq.s32.totalorder %s13, 1
      %p98 = por %p96, %p97
      %p99 = scmp.ne.s32.totalorder %s91, %s94
      %p100 = scmp.eq.s32.totalorder %s13, 0
      %p101 = por %p99, %p100
      %p102 = scmp.ne.s32.totalorder %s91, %s94
      %p103 = scmp.eq.s32.totalorder %s18, 1
      %p104 = por %p102, %p103
      %p105 = scmp.ne.s32.totalorder %s94, %s95
      %p106 = scmp.eq.s32.totalorder %s18, 0
      %p107 = por %p105, %p106
      %p108 = scmp.ne.s32.totalorder %s94, %s95
      %p109 = scmp.eq.s32.totalorder %s19, 1
      %p110 = por %p108, %p109
      %p112 = scmp.ne.s32.totalorder %s95, %s111
      %p113 = scmp.eq.s32.totalorder %s19, 0
      %p114 = por %p112, %p113
      %s116 = sadd.s32 %s115, 1
      %p119 = scmp.eq.s32.totalorder %s13, 1
      %p120 = scmp.ne.s32.totalorder %s115, %s117
      %p121 = scmp.eq.s32.totalorder %s13, 0
      %p122 = por %p120, %p121
      %p123 = scmp.ne.s32.totalorder %s115, %s117
      %p124 = scmp.eq.s32.totalorder %s18, 1
      %p125 = por %p123, %p124
      %p126 = scmp.ne.s32.totalorder %s117, %s118
      %p127 = scmp.eq.s32.totalorder %s18, 0
      %p128 = por %p126, %p127
      %p129 = scmp.ne.s32.totalorder %s117, %s118
      %p130 = scmp.eq.s32.totalorder %s19, 1
      %p131 = por %p129, %p130
      %p133 = scmp.ne.s32.totalorder %s118, %s132
      %p134 = scmp.eq.s32.totalorder %s19, 0
      %p135 = por %p133, %p134
      %s136 = ssub.s32 %s20, %s32
      %p137 = scmp.eq.s32.totalorder %s136, 0
      %s139 = sadd.s32 %s138, 1
      %s140 = scalar_select %p137, %s138, %s139
      %p143 = pneg %p137
      %p144 = scmp.eq.s32.totalorder %s13, 1
      %p145 = por %p143, %p144
      %p146 = scmp.ne.s32.totalorder %s138, %s141
      %p147 = scmp.eq.s32.totalorder %s13, 0
      %p148 = por %p146, %p147
      %p149 = scmp.ne.s32.totalorder %s138, %s141
      %p150 = scmp.eq.s32.totalorder %s18, 1
      %p151 = por %p149, %p150
      %p152 = scmp.ne.s32.totalorder %s141, %s142
      %p153 = scmp.eq.s32.totalorder %s18, 0
      %p154 = por %p152, %p153
      %p155 = scmp.ne.s32.totalorder %s141, %s142
      %p156 = scmp.eq.s32.totalorder %s19, 1
      %p157 = por %p155, %p156
      %p159 = scmp.ne.s32.totalorder %s142, %s158
      %p160 = scmp.eq.s32.totalorder %s19, 0
      %p161 = por %p159, %p160
      %p162 = scmp.le.s32.totalorder 1, %s13
      %p163 = scmp.lt.s32.totalorder %s13, 3
      %p164 = pnand %p162, %p163
      %p165 = pneg %p164
      // Predicated region
      $region9: #{tpu_custom_call.1} parent=5 // pred_check
        _
      $region10: #{tpu_custom_call.1} parent=5 // pred_check_branch
        %167 = sbr.rel (%p164) target = $region12
      $region11: #{tpu_custom_call.1} parent=5 // pred_region
        %s168 = ssub.s32 %s13, 1
        // Predicated region
        $region13: #{tpu_custom_call.1} parent=11 // pred_check
          %p169 = pneg %p128
        $region14: #{tpu_custom_call.1} parent=11 // pred_check_branch
          %171 = sbr.rel (%p169) target = $region16
        $region15: #{tpu_custom_call.1} parent=11 // pred_region
          _
        $region16: #{tpu_custom_call.1} parent=11 // pred_fallthru
          _
      $region12: #{tpu_custom_call.1} parent=5 // pred_fallthru
        _
      %p172 = scmp.lt.s32.totalorder %s13, 2
      // Predicated region
      $region17: #{tpu_custom_call.1} parent=5 // pred_check
        %p173 = pneg %p172
      $region18: #{tpu_custom_call.1} parent=5 // pred_check_branch
        %175 = sbr.rel (%p173) target = $region20
      $region19: #{tpu_custom_call.1} parent=5 // pred_region
        // Predicated region
        $region21: #{tpu_custom_call.1} parent=19 // pred_check
          %p176 = pneg %p47
        $region22: #{tpu_custom_call.1} parent=19 // pred_check_branch
          %178 = sbr.rel (%p176) target = $region24
        $region23: #{tpu_custom_call.1} parent=19 // pred_region
          %s179 = smul.u32 16, %s21
          %p180 = scmp.lt.s32.totalorder %s20, 1
          %s181 = scalar_select %p180, %s20, 1
          %p182 = scmp.lt.s32.totalorder %s179, 15
          %s183 = scalar_select %p182, %s179, 15
          %s184 = smul.addr %s181, 16
          %s185 = sadd.s32 %s183, %s184
          %s186 = smul.addr %s185, 8
          %s187 = scalar_lea.vmem %s0, %s186
          %s188 = smul.u32 16, %s21
        $region24: #{tpu_custom_call.1} parent=19 // pred_fallthru
          _
        // Predicated region
        $region25: #{tpu_custom_call.1} parent=19 // pred_check
          %p189 = pneg %p75
        $region26: #{tpu_custom_call.1} parent=19 // pred_check_branch
          %191 = sbr.rel (%p189) target = $region28
        $region27: #{tpu_custom_call.1} parent=19 // pred_region
          %s192 = smul.u32 16, %s21
          %p193 = scmp.lt.s32.totalorder %s20, 1
          %s194 = scalar_select %p193, %s20, 1
          %p195 = scmp.lt.s32.totalorder %s192, 15
          %s196 = scalar_select %p195, %s192, 15
          %s197 = smul.addr %s194, 16
          %s198 = sadd.s32 %s196, %s197
          %s199 = smul.addr %s198, 8
          %s200 = scalar_lea.vmem %s1, %s199
          %s201 = smul.u32 16, %s21
        $region28: #{tpu_custom_call.1} parent=19 // pred_fallthru
          _
        // Predicated region
        $region29: #{tpu_custom_call.1} parent=19 // pred_check
          %p202 = pneg %p101
        $region30: #{tpu_custom_call.1} parent=19 // pred_check_branch
          %204 = sbr.rel (%p202) target = $region32
        $region31: #{tpu_custom_call.1} parent=19 // pred_region
          %p205 = scmp.lt.s32.totalorder %s20, 1
          %s206 = scalar_select %p205, %s20, 1
          %s207 = scalar_lea.vmem %s2, %s206
        $region32: #{tpu_custom_call.1} parent=19 // pred_fallthru
          _
      $region20: #{tpu_custom_call.1} parent=5 // pred_fallthru
        _
      %p208 = scmp.le.s32.totalorder 1, %s13
      %p209 = scmp.lt.s32.totalorder %s13, 3
      %p210 = pnand %p208, %p209
      %p211 = pneg %p210
      // Predicated region
      $region33: #{tpu_custom_call.1} parent=5 // pred_check
        _
      $region34: #{tpu_custom_call.1} parent=5 // pred_check_branch
        %213 = sbr.rel (%p210) target = $region36
      $region35: #{tpu_custom_call.1} parent=5 // pred_region
        %s214 = ssub.s32 %s13, 1
        %s215 = smul.u32 16, %s23
        %p216 = scmp.lt.s32.totalorder %s22, 1
        %s217 = scalar_select %p216, %s22, 1
        %p218 = scmp.lt.s32.totalorder %s215, 15
        %s219 = scalar_select %p218, %s215, 15
        %s220 = smul.addr %s217, 16
        %s221 = sadd.s32 %s219, %s220
        %s222 = smul.addr %s221, 8
        %s223 = scalar_lea.vmem %s0, %s222
        %p224 = pneg %p53
        %p225 = pneg %p50
        %s226 = smul.u32 16, %s23
        %p227 = scmp.lt.s32.totalorder %s22, 1
        %s228 = scalar_select %p227, %s22, 1
        %p229 = scmp.lt.s32.totalorder %s226, 15
        %s230 = scalar_select %p229, %s226, 15
        %s231 = smul.addr %s228, 16
        %s232 = sadd.s32 %s230, %s231
        %s233 = smul.addr %s232, 8
        %s234 = scalar_lea.vmem %s1, %s233
        %p235 = pneg %p81
        %p236 = pneg %p78
        %p237 = scmp.lt.s32.totalorder %s22, 1
        %s238 = scalar_select %p237, %s22, 1
        %s239 = scalar_lea.vmem %s2, %s238
        %p240 = pneg %p107
        %p241 = pneg %p104
        %p242 = pneg %p128
        %p243 = pneg %p125
        %p244 = pneg %p154
        %p245 = pneg %p151
        %s246 = sand.u32 %s141, 1
        %s247 = scalar_lea.sflag [#allocation3], %s246
        %s248 = sand.u32 %s141, 1
        %s249 = scalar_lea.vmem [#allocation2], %s248
        %s250 = smul.u32 16, %s23
        %p251 = scmp.lt.s32.totalorder %s22, 1
        %s252 = scalar_select %p251, %s22, 1
        %p253 = scmp.lt.s32.totalorder %s250, 15
        %s254 = scalar_select %p253, %s250, 15
        %s255 = smul.addr %s252, 16
        %s256 = sadd.s32 %s254, %s255
        %s257 = smul.addr %s256, 8
        %s258 = scalar_lea.vmem %s0, %s257
        %s259 = smul.u32 16, %s23
        %s260 = smul.u32 16, %s23
        %p261 = scmp.lt.s32.totalorder %s22, 1
        %s262 = scalar_select %p261, %s22, 1
        %p263 = scmp.lt.s32.totalorder %s260, 15
        %s264 = scalar_select %p263, %s260, 15
        %s265 = smul.addr %s262, 16
        %s266 = sadd.s32 %s264, %s265
        %s267 = smul.addr %s266, 8
        %s268 = scalar_lea.vmem %s1, %s267
        %s269 = smul.u32 16, %s23
        %p270 = scmp.lt.s32.totalorder %s22, 1
        %s271 = scalar_select %p270, %s22, 1
        %s272 = scalar_lea.vmem %s2, %s271
        %v273 = vld [vmem:[%s258] sm:$0xff]
        %v274 = vld [vmem:[%s258 + $0x8] sm:$0xff]
        %v275 = vld [vmem:[%s258 + $0x10] sm:$0xff]
        %v276 = vld [vmem:[%s258 + $0x18] sm:$0xff]
        %v277 = vld [vmem:[%s258 + $0x20] sm:$0xff]
        %v278 = vld [vmem:[%s258 + $0x28] sm:$0xff]
        %v279 = vld [vmem:[%s258 + $0x30] sm:$0xff]
        %v280 = vld [vmem:[%s258 + $0x38] sm:$0xff]
        %v281 = vld [vmem:[%s258 + $0x40] sm:$0xff]
        %v282 = vld [vmem:[%s258 + $0x48] sm:$0xff]
        %v283 = vld [vmem:[%s258 + $0x50] sm:$0xff]
        %v284 = vld [vmem:[%s258 + $0x58] sm:$0xff]
        %v285 = vld [vmem:[%s258 + $0x60] sm:$0xff]
        %v286 = vld [vmem:[%s258 + $0x68] sm:$0xff]
        %v287 = vld [vmem:[%s258 + $0x70] sm:$0xff]
        %v288 = vld [vmem:[%s258 + $0x78] sm:$0xff]
        %v289 = vld [vmem:[%s268] sm:$0xff]
        %v290 = vld [vmem:[%s268 + $0x8] sm:$0xff]
        %v291 = vld [vmem:[%s268 + $0x10] sm:$0xff]
        %v292 = vld [vmem:[%s268 + $0x18] sm:$0xff]
        %v293 = vld [vmem:[%s268 + $0x20] sm:$0xff]
        %v294 = vld [vmem:[%s268 + $0x28] sm:$0xff]
        %v295 = vld [vmem:[%s268 + $0x30] sm:$0xff]
        %v296 = vld [vmem:[%s268 + $0x38] sm:$0xff]
        %v297 = vld [vmem:[%s268 + $0x40] sm:$0xff]
        %v298 = vld [vmem:[%s268 + $0x48] sm:$0xff]
        %v299 = vld [vmem:[%s268 + $0x50] sm:$0xff]
        %v300 = vld [vmem:[%s268 + $0x58] sm:$0xff]
        %v301 = vld [vmem:[%s268 + $0x60] sm:$0xff]
        %v302 = vld [vmem:[%s268 + $0x68] sm:$0xff]
        %v303 = vld [vmem:[%s268 + $0x70] sm:$0xff]
        %v304 = vld [vmem:[%s268 + $0x78] sm:$0xff]
        %v305 = vmul.f32 %v273, %v289
        %v306 = vmul.f32 %v274, %v290
        %v307 = vmul.f32 %v275, %v291
        %v308 = vmul.f32 %v276, %v292
        %v309 = vmul.f32 %v277, %v293
        %v310 = vmul.f32 %v278, %v294
        %v311 = vmul.f32 %v279, %v295
        %v312 = vmul.f32 %v280, %v296
        %v313 = vmul.f32 %v281, %v297
        %v314 = vmul.f32 %v282, %v298
        %v315 = vmul.f32 %v283, %v299
        %v316 = vmul.f32 %v284, %v300
        %v317 = vmul.f32 %v285, %v301
        %v318 = vmul.f32 %v286, %v302
        %v319 = vmul.f32 %v287, %v303
        %v320 = vmul.f32 %v288, %v304
        %v321 = vld [vmem:[%s3] sm:$0x1]
        %vm322 = vcmask 261120
        %v324 = vsel %vm322, %v321, 0
        %v327 = vsel %vm322, %v305, 0
        %v330 = vsel %vm322, %v306, 0
        %v333 = vsel %vm322, %v307, 0
        %v336 = vsel %vm322, %v308, 0
        %v339 = vsel %vm322, %v309, 0
        %v342 = vsel %vm322, %v310, 0
        %v345 = vsel %vm322, %v311, 0
        %v348 = vsel %vm322, %v312, 0
        %v351 = vsel %vm322, %v313, 0
        %v354 = vsel %vm322, %v314, 0
        %v357 = vsel %vm322, %v315, 0
        %v360 = vsel %vm322, %v316, 0
        %v363 = vsel %vm322, %v317, 0
        %v366 = vsel %vm322, %v318, 0
        %v369 = vsel %vm322, %v319, 0
        %v372 = vsel %vm322, %v320, 0
        %374 = vmatpush.xpose.msra.mxu0 %v372
        %375 = vmatpush.xpose.msra.mxu0 %v369
        %376 = vmatpush.xpose.msra.mxu0 %v366
        %377 = vmatpush.xpose.msra.mxu0 %v363
        %378 = vmatpush.xpose.msra.mxu0 %v360
        %379 = vmatpush.xpose.msra.mxu0 %v357
        %380 = vmatpush.xpose.msra.mxu0 %v354
        %381 = vmatpush.xpose.msra.mxu0 %v351
        %382 = vmatpush.xpose.msra.mxu0 %v348
        %383 = vmatpush.xpose.msra.mxu0 %v345
        %384 = vmatpush.xpose.msra.mxu0 %v342
        %385 = vmatpush.xpose.msra.mxu0 %v339
        %386 = vmatpush.xpose.msra.mxu0 %v336
        %387 = vmatpush.xpose.msra.mxu0 %v333
        %388 = vmatpush.xpose.msra.mxu0 %v330
        %389 = vmatpush.xpose.msra.mxu0 %v327
        %390 = vmatmul.f32.gmra.mxu0 %v324
        %v391 = vpop.f32.mrf.mxu0
        %v392 = vadd.f32 0.0, %v391
        %393 = vdwg.mxu0
        %s394 = scalar_lea.vmem %s249, %s23 [#allocation2]
        %395 = vst [vmem:[%s394] sm:$0x1] %v392
        %p396 = scmp.eq.s32.totalorder %s23, 0
        // Predicated region
        $region37: #{tpu_custom_call.1} parent=35 // pred_check
          %p397 = pneg %p396
        $region38: #{tpu_custom_call.1} parent=35 // pred_check_branch
          %399 = sbr.rel (%p397) target = $region40
        $region39: #{tpu_custom_call.1} parent=35 // pred_region
          %v400 = vld [vmem:[%s249] sm:$0x1]
          %v401 = vld [vmem:[%s272] sm:$0x1]
          %v402 = vadd.f32 %v400, %v401
          %vm403 = vcmask 1040384
          %v404 = vsel %vm403, %v402, -inf
          %405 = vmax.xlane.f32.xlu0 %v404
          %v406 = vpop.xlane.xlu0 %405
          %v407 = vsub.f32 %v402, %v406
          %v408 = vmul.f32 %v407, 1.442695
          %v409 = vpow.pop %v408
          %v410 = vsel %vm403, %v409, 0.0
          %411 = vadd.xlane.f32.xlu0 %v410
          %v412 = vpop.xlane.xlu0 %411
          %v413 = vadd.f32 %v412, 0.0
          %v414 = vrcp.pop %v413
          %v415 = vmul.f32 %v413, %v414
          %v416 = vsub.f32 1.0, %v415
          %v417 = vmul.f32 %v414, %v416
          %v418 = vadd.f32 %v414, %v417
          %vm419 = vweird.f32 %v413
          %vm420 = vweird.f32 %v414
          %vm421 = vmor %vm419, %vm420
          %v422 = vsel %vm421, %v414, %v418
          %v423 = vand.u32 2147483647, %v413
          %vm424 = vcmp.eq.f32.partialorder %v423, 8.507059e+37
          %v425 = vand.u32 %v413, 2147483648
          %v426 = vor.u32 1.1754944e-38, %v425
          %v427 = vsel %vm424, %v426, %v422
          %v428 = vmul.f32 %v409, %v427
          %429 = vst [vmem:[%s249] sm:$0x1] %v428
        $region40: #{tpu_custom_call.1} parent=35 // pred_fallthru
          _
        %s430 = sand.u32 %s141, 1
        %s431 = scalar_lea.sflag [#allocation3], %s430
        %s432 = sand.u32 %s141, 1
        %s433 = scalar_lea.vmem [#allocation2], %s432
        // Predicated region
        $region41: #{tpu_custom_call.1} parent=35 // pred_check
          %p434 = pneg %p151
        $region42: #{tpu_custom_call.1} parent=35 // pred_check_branch
          %436 = sbr.rel (%p434) target = $region44
        $region43: #{tpu_custom_call.1} parent=35 // pred_region
          %438 = vsyncadd %s431, 0
          %s439 = scalar_lea.hbm %s4, %s22
          %s441 = sshll.u32 %s433, 4
          %s442 = int_to_ptr.vmem [resolvable:$true] %s441
          %s443 = sshll.u32 %s439, 4
          %s444 = int_to_ptr.hbm [resolvable:$true] %s443
          %446 = dma.vmem_to_hbm [thread:$0]  %s442, 16, %s444, %s431
        $region44: #{tpu_custom_call.1} parent=35 // pred_fallthru
          _
      $region36: #{tpu_custom_call.1} parent=5 // pred_fallthru
        _
      %p447 = scmp.le.s32.totalorder 2, %s13
      // Predicated region
      $region45: #{tpu_custom_call.1} parent=5 // pred_check
        %p448 = pneg %p447
      $region46: #{tpu_custom_call.1} parent=5 // pred_check_branch
        %450 = sbr.rel (%p448) target = $region48
      $region47: #{tpu_custom_call.1} parent=5 // pred_region
        %s451 = ssub.s32 %s13, 2
        // Predicated region
        $region49: #{tpu_custom_call.1} parent=47 // pred_check
          %p452 = pneg %p157
        $region50: #{tpu_custom_call.1} parent=47 // pred_check_branch
          %454 = sbr.rel (%p452) target = $region52
        $region51: #{tpu_custom_call.1} parent=47 // pred_region
          %s455 = sand.u32 %s142, 1
          %s456 = scalar_lea.sflag [#allocation3], %s455
          %s457 = sand.u32 %s142, 1
          %s458 = scalar_lea.vmem [#allocation2], %s457
          %460 = dma.done %s456, 16
        $region52: #{tpu_custom_call.1} parent=47 // pred_fallthru
          _
      $region48: #{tpu_custom_call.1} parent=5 // pred_fallthru
        _
    $region6: #{tpu_custom_call.1} parent=1 // loop_footer
      %s17 = sadd.s32 1, %s13
    $region7: #{tpu_custom_call.1} parent=1 // loop_footer_branch
      %12 = sbr.rel target = $region3
    $region8: #{tpu_custom_call.1} parent=1 // loop_exit
      _
    %461 = vsyncpa [#allocation3], 1
    %s462 = scalar_lea.sflag [#allocation3], 1
    %463 = vsyncpa %s462, 1

</llo_original>
